<compile_context>
chip_gen: v6e
topology: v6e:2x2x1
jax: 0.10.0
libtpu: 0.0.40
codegen_flags: <defaults>
</compile_context>

<pallas_src>
import functools
import math

import jax
import jax.numpy as jnp
from jax.experimental import pallas as pl
from jax.experimental.pallas import tpu as pltpu


def _round_up(x, m):
    return ((x + m - 1) // m) * m


def actor_kernel(obs_ref, actT_ref,
                 w0_ref, b0_ref, w1_ref, b1_ref, w2_ref, b2_ref,
                 out_ref, *, act_dim):
    """Fused MLP forward + ContinuousBernoulli(logits).log_prob(act).sum over act_dim.

    All activations are computed feature-major (features on sublanes, batch on lanes)
    so the elementwise / transcendental work is fully lane-dense.
    """
    mxu = w0_ref.dtype  # bf16 MXU operands, f32 accumulation

    # --- logits_net: Linear -> tanh -> Linear -> tanh -> Linear (feature-major) ---
    x = obs_ref[...].astype(mxu)                                       # (TB, obs_dim)
    # h1^T = W0 @ x^T : contract both minor dims, no explicit transpose needed.
    h = jax.lax.dot_general(w0_ref[...], x, (((1,), (1,)), ((), ())),
                            preferred_element_type=jnp.float32) + b0_ref[...]
    h = jnp.tanh(h)                                                    # (h1, TB) f32, lane-dense
    h = jnp.dot(w1_ref[...], h.astype(mxu),
                preferred_element_type=jnp.float32) + b1_ref[...]
    h = jnp.tanh(h)                                                    # (h2, TB)
    # Final layer carries one extra zero row; it is overwritten with log_prob below so
    # the only HBM store is a single lane-dense (act_dim+1, TB) slab.
    slab = jnp.dot(w2_ref[...], h.astype(mxu),
                   preferred_element_type=jnp.float32) + b2_ref[...]   # (act_dim+1, TB)
    logits = slab[:act_dim, :]                                         # (act_dim, TB)

    # --- ContinuousBernoulli(logits=logits).log_prob(act), feature-major ---
    value = actT_ref[...]                                              # (act_dim, TB) f32
    abs_l = jnp.abs(logits)
    e = jnp.exp(-abs_l)                                                # reused: BCE + sigmoid
    # -binary_cross_entropy_with_logits(logits, value)
    neg_bce = value * logits - jnp.maximum(logits, 0.0) - jnp.log1p(e)

    # sigmoid(logits) from the exp we already have; approx reciprocal (~2^-12 rel err).
    inv = pl.reciprocal(1.0 + e, approx=True)
    sig = jnp.where(logits >= 0.0, inv, e * inv)

    # log normalizing constant (mirrors torch.distributions.ContinuousBernoulli)
    eps = float(jnp.finfo(jnp.float32).eps)
    probs = jnp.clip(sig, eps, 1.0 - eps)
    lims_lo, lims_hi = 0.499, 0.501
    outside = jnp.logical_or(probs < lims_lo, probs > lims_hi)
    cut = jnp.where(outside, probs, lims_lo)
    # where(cut<0.5, log1p(-2*cut), log(2*cut-1)) == log|1 - 2*cut|  (merged branch).
    # NOTE: first term kept torch-faithful; the log|logits| shortcut differs inside the
    # eps-clip region (|logits| > ~15.9), so it is not applied here.
    log_norm = (jnp.log(jnp.abs(jnp.log1p(-cut) - jnp.log(cut)))
                - jnp.log(jnp.abs(1.0 - 2.0 * cut)))
    xc = (probs - 0.5) ** 2
    taylor = math.log(2.0) + (4.0 / 3.0 + 104.0 / 45.0 * xc) * xc
    log_c = jnp.where(outside, log_norm, taylor)

    logp = jnp.sum(neg_bce + log_c, axis=0, keepdims=True)             # (1, TB) sublane reduce

    # Pack: rows [0, act_dim) = logits, row act_dim = log_prob; one lane-dense store.
    row = jax.lax.broadcasted_iota(jnp.int32, slab.shape, 0)
    out_ref[...] = jnp.where(row == act_dim, logp, slab)


def prepare_params(params, mxu_dtype=jnp.bfloat16):
    """One-time param prep (hoisted out of the per-call path).

    Input weights are (in_dim, out_dim); the kernel consumes them transposed to
    (out_dim, in_dim) so activations are computed feature-major.  Biases become
    (out_dim, 1) f32 columns (broadcast over the batch/lane axis).  The last layer
    gains one zero output row that the kernel overwrites with log_prob.
    """
    (w0, b0), (w1, b1), (w2, b2) = params
    act_dim = w2.shape[1]
    w2t = jnp.zeros((act_dim + 1, w2.shape[0]), mxu_dtype)
    w2t = w2t.at[:act_dim, :].set(w2.T.astype(mxu_dtype))
    b2c = jnp.zeros((act_dim + 1, 1), jnp.float32).at[:act_dim, 0].set(b2.astype(jnp.float32))
    return dict(
        w0=w0.T.astype(mxu_dtype), b0=b0.reshape(-1, 1).astype(jnp.float32),
        w1=w1.T.astype(mxu_dtype), b1=b1.reshape(-1, 1).astype(jnp.float32),
        w2=w2t, b2=b2c, act_dim=act_dim, mxu_dtype=mxu_dtype)


def actor_forward(obs, act, prepared, *, tile_b=4096):
    """Returns (logits, log_prob): the distribution parameters (n, act_dim) and the
    summed ContinuousBernoulli log-likelihood (n,).

    tile_b: batch tile size (lane axis of the feature-major compute).  Default 4096
    amortizes the ~0.35 us per-grid-step overhead to <10%; it is capped at ceil(n/2)
    (rounded up to 128) so large batches always give >= 2 grid steps, letting the
    "parallel" batch axis shard across v7x's two TensorCores (harmless on v5e/v6e).
    Per-step VMEM is well under 1 MiB, so no vmem_limit_bytes tuning is needed.
    """
    # TODO(synk): the torch module's `act=None` path (return the distribution only) is
    # not exercised here; callers that don't need log_prob can just take the logits.
    n, obs_dim = obs.shape
    act_dim = prepared["act_dim"]
    assert act.shape == (n, act_dim)

    # Batch sits on the lane axis -> tile must be a multiple of 128.
    tb = max(128, min(_round_up(tile_b, 128), _round_up(pl.cdiv(n, 2), 128)))
    grid = (pl.cdiv(n, tb),)  # non-dividing grid: partial last block, OOB lanes masked on store

    obs_x = obs.astype(prepared["mxu_dtype"])   # bf16 feed: halves the obs HBM read
    act_t = jnp.asarray(act, jnp.float32).T     # (act_dim, n) f32 for the CB math

    def resident(shape):  # weights/biases: same block every step -> stay VMEM-resident
        return pl.BlockSpec(shape, lambda i: (0, 0))

    out = pl.pallas_call(
        functools.partial(actor_kernel, act_dim=act_dim),
        out_shape=jax.ShapeDtypeStruct((act_dim + 1, n), jnp.float32),
        grid=grid,
        in_specs=[
            pl.BlockSpec((tb, obs_dim), lambda i: (i, 0)),
            pl.BlockSpec((act_dim, tb), lambda i: (0, i)),
            resident(prepared["w0"].shape), resident(prepared["b0"].shape),
            resident(prepared["w1"].shape), resident(prepared["b1"].shape),
            resident(prepared["w2"].shape), resident(prepared["b2"].shape),
        ],
        out_specs=pl.BlockSpec((act_dim + 1, tb), lambda i: (0, i)),
        compiler_params=pltpu.CompilerParams(
            dimension_semantics=("parallel",)),
    )(obs_x, act_t,
      prepared["w0"], prepared["b0"],
      prepared["w1"], prepared["b1"],
      prepared["w2"], prepared["b2"])

    logits = out[:act_dim, :].T          # (n, act_dim)
    log_prob = out[act_dim, :]           # (n,)
    return logits, log_prob


def reference_forward(obs, act, params, mxu_dtype=None):
    """Pure-JAX reference (torch-faithful math).  mxu_dtype=bf16 mirrors the kernel's
    matmul precision; None keeps full-f32 matmuls."""
    h = obs.astype(jnp.float32)
    for i, (w, b) in enumerate(params):
        if mxu_dtype is None:
            h = jnp.dot(h, w.astype(jnp.float32)) + b.astype(jnp.float32)
        else:
            h = jnp.dot(h.astype(mxu_dtype), w.astype(mxu_dtype),
                        preferred_element_type=jnp.float32) + b.astype(jnp.float32)
        if i < len(params) - 1:
            h = jnp.tanh(h)
    logits = h
    value = act.astype(jnp.float32)
    neg_bce = value * logits - jnp.maximum(logits, 0.0) - jnp.log1p(jnp.exp(-jnp.abs(logits)))
    eps = float(jnp.finfo(jnp.float32).eps)
    probs = jnp.clip(jax.nn.sigmoid(logits), eps, 1.0 - eps)
    outside = jnp.logical_or(probs < 0.499, probs > 0.501)
    cut = jnp.where(outside, probs, 0.499)
    cut_below = jnp.where(cut < 0.5, cut, jnp.zeros_like(cut))
    cut_above = jnp.where(cut >= 0.5, cut, jnp.ones_like(cut))
    log_norm = (jnp.log(jnp.abs(jnp.log1p(-cut) - jnp.log(cut)))
                - jnp.where(cut < 0.5, jnp.log1p(-2.0 * cut_below),
                            jnp.log(2.0 * cut_above - 1.0)))
    xc = (probs - 0.5) ** 2
    taylor = math.log(2.0) + (4.0 / 3.0 + 104.0 / 45.0 * xc) * xc
    log_c = jnp.where(outside, log_norm, taylor)
    return logits, jnp.sum(neg_bce + log_c, axis=-1)


if __name__ == "__main__":
    # Small shapes consistent with the module: obs (n, obs_dim), act (n, act_dim)
    n, obs_dim, act_dim = 300, 16, 8
    hidden_sizes = (32, 32)

    key = jax.random.PRNGKey(0)
    k_obs, k_act, *k_w = jax.random.split(key, 2 + len(hidden_sizes) + 1)

    obs = jax.random.normal(k_obs, (n, obs_dim), dtype=jnp.float32)
    act = jax.random.uniform(k_act, (n, act_dim), dtype=jnp.float32)  # CB support is [0, 1]

    # Deterministic parameter init (stands in for actor_init); weights are (in, out).
    sizes = [obs_dim] + list(hidden_sizes) + [act_dim]
    params = []
    for i, kw in enumerate(k_w):
        fan_in, fan_out = sizes[i], sizes[i + 1]
        w = jax.random.normal(kw, (fan_in, fan_out), dtype=jnp.float32) / jnp.sqrt(fan_in)
        b = jnp.zeros((fan_out,), dtype=jnp.float32)
        params.append((w, b))

    prepared = prepare_params(params)   # one-time prep (transpose / cast / pad)

    # tile_b=128 is deliberately tiny so the 300-row toy batch exercises a multi-step
    # grid (3 tiles, incl. a partial last block); production default is 4096.
    logits, log_prob = actor_forward(obs, act, prepared, tile_b=128)
    jax.block_until_ready((logits, log_prob))

    assert logits.shape == (n, act_dim) and log_prob.shape == (n,)
    assert bool(jnp.all(jnp.isfinite(logits))) and bool(jnp.all(jnp.isfinite(log_prob)))

    # Tight check vs. a reference that mirrors the kernel's bf16 MXU operands.
    ref_logits, ref_logp = reference_forward(obs, act, params, mxu_dtype=jnp.bfloat16)
    assert jnp.allclose(logits, ref_logits, atol=1e-3, rtol=1e-3)
    assert jnp.allclose(log_prob, ref_logp, atol=1e-2, rtol=1e-2)

    # Loose sanity check of the bf16 MXU path vs. full-f32 (PyTorch-exact) math.
    f32_logits, _ = reference_forward(obs, act, params)
    assert jnp.allclose(logits, f32_logits, atol=1e-1, rtol=1e-1)

    print("KERNEL_OK")
</pallas_src>

<mosaic_0001>
module attributes {stable_mosaic.version = 11 : i64} {
  func.func @actor_kernel(%arg0: i32, %arg1: memref<128x16xbf16, #tpu.memory_space<vmem>>, %arg2: memref<8x128xf32, #tpu.memory_space<vmem>>, %arg3: memref<32x16xbf16, #tpu.memory_space<vmem>>, %arg4: memref<32x1xf32, #tpu.memory_space<vmem>>, %arg5: memref<32x32xbf16, #tpu.memory_space<vmem>>, %arg6: memref<32x1xf32, #tpu.memory_space<vmem>>, %arg7: memref<9x32xbf16, #tpu.memory_space<vmem>>, %arg8: memref<9x1xf32, #tpu.memory_space<vmem>>, %arg9: memref<9x128xf32, #tpu.memory_space<vmem>>) attributes {dimension_semantics = [#tpu.dimension_semantics<parallel>], iteration_bounds = array<i64: 3>, scalar_prefetch = 0 : i64, scratch_operands = 0 : i64, tpu.core_type = #tpu.core_type<tc>, window_params = [{transform_indices = @transform_0, window_bounds = array<i64: 128, 16>}, {transform_indices = @transform_1, window_bounds = array<i64: 8, 128>}, {pipeline_mode = #tpu.pipeline_mode<synchronous>, transform_indices = @transform_2, window_bounds = array<i64: 32, 16>}, {pipeline_mode = #tpu.pipeline_mode<synchronous>, transform_indices = @transform_3, window_bounds = array<i64: 32, 1>}, {pipeline_mode = #tpu.pipeline_mode<synchronous>, transform_indices = @transform_4, window_bounds = array<i64: 32, 32>}, {pipeline_mode = #tpu.pipeline_mode<synchronous>, transform_indices = @transform_5, window_bounds = array<i64: 32, 1>}, {pipeline_mode = #tpu.pipeline_mode<synchronous>, transform_indices = @transform_6, window_bounds = array<i64: 9, 32>}, {pipeline_mode = #tpu.pipeline_mode<synchronous>, transform_indices = @transform_7, window_bounds = array<i64: 9, 1>}, {transform_indices = @transform_8, window_bounds = array<i64: 9, 128>}]} {
    %c0 = arith.constant 0 : index
    %c0_0 = arith.constant 0 : index
    %0 = vector.load %arg1[%c0, %c0_0] : memref<128x16xbf16, #tpu.memory_space<vmem>>, vector<128x16xbf16>
    %c0_1 = arith.constant 0 : index
    %c0_2 = arith.constant 0 : index
    %1 = vector.load %arg3[%c0_1, %c0_2] : memref<32x16xbf16, #tpu.memory_space<vmem>>, vector<32x16xbf16>
    %cst = arith.constant dense<0.000000e+00> : vector<32x128xf32>
    %2 = tpu.matmul %1, %0, %cst {dimension_numbers = #tpu.dot_dimension_numbers<[1], [1], [0], [0], [0, 0, 1, 0], [], []>} : vector<32x16xbf16>, vector<128x16xbf16>, vector<32x128xf32> -> vector<32x128xf32>
    %c0_3 = arith.constant 0 : index
    %c0_4 = arith.constant 0 : index
    %3 = vector.load %arg4[%c0_3, %c0_4] : memref<32x1xf32, #tpu.memory_space<vmem>>, vector<32x1xf32>
    %4 = vector.broadcast %3 : vector<32x1xf32> to vector<32x128xf32>
    %5 = arith.addf %2, %4 : vector<32x128xf32>
    %6 = math.tanh %5 : vector<32x128xf32>
    %c0_5 = arith.constant 0 : index
    %c0_6 = arith.constant 0 : index
    %7 = vector.load %arg5[%c0_5, %c0_6] : memref<32x32xbf16, #tpu.memory_space<vmem>>, vector<32x32xbf16>
    %8 = arith.truncf %6 : vector<32x128xf32> to vector<32x128xbf16>
    %cst_7 = arith.constant dense<0.000000e+00> : vector<32x128xf32>
    %9 = tpu.matmul %7, %8, %cst_7 {dimension_numbers = #tpu.dot_dimension_numbers<[1], [0], [0], [1], [0, 0, 1, 1], [], []>} : vector<32x32xbf16>, vector<32x128xbf16>, vector<32x128xf32> -> vector<32x128xf32>
    %c0_8 = arith.constant 0 : index
    %c0_9 = arith.constant 0 : index
    %10 = vector.load %arg6[%c0_8, %c0_9] : memref<32x1xf32, #tpu.memory_space<vmem>>, vector<32x1xf32>
    %11 = vector.broadcast %10 : vector<32x1xf32> to vector<32x128xf32>
    %12 = arith.addf %9, %11 : vector<32x128xf32>
    %13 = math.tanh %12 : vector<32x128xf32>
    %c0_10 = arith.constant 0 : index
    %c0_11 = arith.constant 0 : index
    %14 = vector.load %arg7[%c0_10, %c0_11] : memref<9x32xbf16, #tpu.memory_space<vmem>>, vector<9x32xbf16>
    %15 = arith.truncf %13 : vector<32x128xf32> to vector<32x128xbf16>
    %cst_12 = arith.constant dense<0.000000e+00> : vector<9x128xf32>
    %16 = tpu.matmul %14, %15, %cst_12 {dimension_numbers = #tpu.dot_dimension_numbers<[1], [0], [0], [1], [0, 0, 1, 1], [], []>} : vector<9x32xbf16>, vector<32x128xbf16>, vector<9x128xf32> -> vector<9x128xf32>
    %c0_13 = arith.constant 0 : index
    %c0_14 = arith.constant 0 : index
    %17 = vector.load %arg8[%c0_13, %c0_14] : memref<9x1xf32, #tpu.memory_space<vmem>>, vector<9x1xf32>
    %18 = vector.broadcast %17 : vector<9x1xf32> to vector<9x128xf32>
    %19 = arith.addf %16, %18 : vector<9x128xf32>
    %20 = vector.extract_strided_slice %19 {offsets = [0, 0], sizes = [8, 128], strides = [1, 1]} : vector<9x128xf32> to vector<8x128xf32>
    %c0_15 = arith.constant 0 : index
    %c0_16 = arith.constant 0 : index
    %21 = vector.load %arg2[%c0_15, %c0_16] : memref<8x128xf32, #tpu.memory_space<vmem>>, vector<8x128xf32>
    %22 = math.absf %20 : vector<8x128xf32>
    %cst_17 = arith.constant 0.000000e+00 : f32
    %23 = vector.broadcast %cst_17 : f32 to vector<8x128xf32>
    %24 = arith.subf %23, %22 : vector<8x128xf32>
    %25 = math.exp %24 : vector<8x128xf32>
    %26 = arith.mulf %21, %20 : vector<8x128xf32>
    %cst_18 = arith.constant 0.000000e+00 : f32
    %27 = vector.broadcast %cst_18 : f32 to vector<8x128xf32>
    %28 = arith.maximumf %20, %27 : vector<8x128xf32>
    %29 = arith.subf %26, %28 : vector<8x128xf32>
    %30 = math.log1p %25 : vector<8x128xf32>
    %31 = arith.subf %29, %30 : vector<8x128xf32>
    %cst_19 = arith.constant 1.000000e+00 : f32
    %32 = vector.broadcast %cst_19 : f32 to vector<8x128xf32>
    %33 = arith.addf %32, %25 : vector<8x128xf32>
    %34 = tpu.reciprocal %33 {approx = true} : vector<8x128xf32> -> vector<8x128xf32>
    %cst_20 = arith.constant 0.000000e+00 : f32
    %35 = vector.broadcast %cst_20 : f32 to vector<8x128xf32>
    %36 = arith.cmpf oge, %20, %35 : vector<8x128xf32>
    %37 = arith.mulf %25, %34 : vector<8x128xf32>
    %38 = arith.select %36, %34, %37 : vector<8x128xi1>, vector<8x128xf32>
    %cst_21 = arith.constant 1.1920929E-7 : f32
    %cst_22 = arith.constant 0.99999988 : f32
    %39 = vector.broadcast %cst_21 : f32 to vector<8x128xf32>
    %40 = arith.maximumf %39, %38 : vector<8x128xf32>
    %41 = vector.broadcast %cst_22 : f32 to vector<8x128xf32>
    %42 = arith.minimumf %41, %40 : vector<8x128xf32>
    %cst_23 = arith.constant 4.990000e-01 : f32
    %43 = vector.broadcast %cst_23 : f32 to vector<8x128xf32>
    %44 = arith.cmpf olt, %42, %43 : vector<8x128xf32>
    %cst_24 = arith.constant 5.010000e-01 : f32
    %45 = vector.broadcast %cst_24 : f32 to vector<8x128xf32>
    %46 = arith.cmpf ogt, %42, %45 : vector<8x128xf32>
    %47 = arith.ori %44, %46 : vector<8x128xi1>
    %cst_25 = arith.constant 4.990000e-01 : f32
    %48 = vector.broadcast %cst_25 : f32 to vector<8x128xf32>
    %49 = arith.select %47, %42, %48 : vector<8x128xi1>, vector<8x128xf32>
    %cst_26 = arith.constant 0.000000e+00 : f32
    %50 = vector.broadcast %cst_26 : f32 to vector<8x128xf32>
    %51 = arith.subf %50, %49 : vector<8x128xf32>
    %52 = math.log1p %51 : vector<8x128xf32>
    %53 = math.log %49 : vector<8x128xf32>
    %54 = arith.subf %52, %53 : vector<8x128xf32>
    %55 = math.absf %54 : vector<8x128xf32>
    %56 = math.log %55 : vector<8x128xf32>
    %cst_27 = arith.constant 2.000000e+00 : f32
    %57 = vector.broadcast %cst_27 : f32 to vector<8x128xf32>
    %58 = arith.mulf %57, %49 : vector<8x128xf32>
    %cst_28 = arith.constant 1.000000e+00 : f32
    %59 = vector.broadcast %cst_28 : f32 to vector<8x128xf32>
    %60 = arith.subf %59, %58 : vector<8x128xf32>
    %61 = math.absf %60 : vector<8x128xf32>
    %62 = math.log %61 : vector<8x128xf32>
    %63 = arith.subf %56, %62 : vector<8x128xf32>
    %cst_29 = arith.constant 5.000000e-01 : f32
    %64 = vector.broadcast %cst_29 : f32 to vector<8x128xf32>
    %65 = arith.subf %42, %64 : vector<8x128xf32>
    %66 = arith.mulf %65, %65 : vector<8x128xf32>
    %cst_30 = arith.constant 2.31111121 : f32
    %67 = vector.broadcast %cst_30 : f32 to vector<8x128xf32>
    %68 = arith.mulf %67, %66 : vector<8x128xf32>
    %cst_31 = arith.constant 1.33333337 : f32
    %69 = vector.broadcast %cst_31 : f32 to vector<8x128xf32>
    %70 = arith.addf %69, %68 : vector<8x128xf32>
    %71 = arith.mulf %70, %66 : vector<8x128xf32>
    %cst_32 = arith.constant 0.693147182 : f32
    %72 = vector.broadcast %cst_32 : f32 to vector<8x128xf32>
    %73 = arith.addf %72, %71 : vector<8x128xf32>
    %74 = arith.select %47, %63, %73 : vector<8x128xi1>, vector<8x128xf32>
    %75 = arith.addf %31, %74 : vector<8x128xf32>
    %cst_33 = arith.constant dense<0.000000e+00> : vector<128xf32>
    %76 = vector.multi_reduction <add>, %75, %cst_33 [0] : vector<8x128xf32> to vector<128xf32>
    %77 = vector.shape_cast %76 : vector<128xf32> to vector<1x128xf32>
    %78 = tpu.iota {dimensions = array<i32: 0>} : vector<9x128xi32>
    %c8_i32 = arith.constant 8 : i32
    %79 = vector.broadcast %c8_i32 : i32 to vector<9x128xi32>
    %80 = arith.cmpi eq, %78, %79 : vector<9x128xi32>
    %81 = vector.shape_cast %77 : vector<1x128xf32> to vector<1x128xf32>
    %82 = vector.broadcast %81 : vector<1x128xf32> to vector<9x128xf32>
    %83 = arith.select %80, %82, %19 : vector<9x128xi1>, vector<9x128xf32>
    %c0_34 = arith.constant 0 : index
    %c0_35 = arith.constant 0 : index
    %84 = vector.load %arg9[%c0_34, %c0_35] : memref<9x128xf32, #tpu.memory_space<vmem>>, vector<9x128xf32>
    tpu.vector_store %arg9[%c0_34, %c0_35], %83 {strides = array<i32>} : memref<9x128xf32, #tpu.memory_space<vmem>>, vector<9x128xf32>,
    return
  }
  func.func @transform_0(%arg0: i32) -> (i32, i32) {
    %c0_i32 = arith.constant 0 : i32
    %c0_i32_0 = arith.constant 0 : i32
    return %arg0, %c0_i32 : i32, i32
  }
  func.func @transform_1(%arg0: i32) -> (i32, i32) {
    %c0_i32 = arith.constant 0 : i32
    %c0_i32_0 = arith.constant 0 : i32
    return %c0_i32, %arg0 : i32, i32
  }
  func.func @transform_2(%arg0: i32) -> (i32, i32) {
    %c0_i32 = arith.constant 0 : i32
    %c0_i32_0 = arith.constant 0 : i32
    %c0_i32_1 = arith.constant 0 : i32
    return %c0_i32, %c0_i32_0 : i32, i32
  }
  func.func @transform_3(%arg0: i32) -> (i32, i32) {
    %c0_i32 = arith.constant 0 : i32
    %c0_i32_0 = arith.constant 0 : i32
    %c0_i32_1 = arith.constant 0 : i32
    return %c0_i32, %c0_i32_0 : i32, i32
  }
  func.func @transform_4(%arg0: i32) -> (i32, i32) {
    %c0_i32 = arith.constant 0 : i32
    %c0_i32_0 = arith.constant 0 : i32
    %c0_i32_1 = arith.constant 0 : i32
    return %c0_i32, %c0_i32_0 : i32, i32
  }
  func.func @transform_5(%arg0: i32) -> (i32, i32) {
    %c0_i32 = arith.constant 0 : i32
    %c0_i32_0 = arith.constant 0 : i32
    %c0_i32_1 = arith.constant 0 : i32
    return %c0_i32, %c0_i32_0 : i32, i32
  }
  func.func @transform_6(%arg0: i32) -> (i32, i32) {
    %c0_i32 = arith.constant 0 : i32
    %c0_i32_0 = arith.constant 0 : i32
    %c0_i32_1 = arith.constant 0 : i32
    return %c0_i32, %c0_i32_0 : i32, i32
  }
  func.func @transform_7(%arg0: i32) -> (i32, i32) {
    %c0_i32 = arith.constant 0 : i32
    %c0_i32_0 = arith.constant 0 : i32
    %c0_i32_1 = arith.constant 0 : i32
    return %c0_i32, %c0_i32_0 : i32, i32
  }
  func.func @transform_8(%arg0: i32) -> (i32, i32) {
    %c0_i32 = arith.constant 0 : i32
    %c0_i32_0 = arith.constant 0 : i32
    return %c0_i32, %arg0 : i32, i32
  }
}

</mosaic_0001>

<llo_original>
// kernel: tpu_custom_call.1
$region0: #{tpu_custom_call.1}
  #allocation0 [shape = 'u32[]', space=smem, size = 0x4, offset = 0x4, fixed_abs, tag = 'smem constant byte address 0x4 - core index']
  #allocation1 [shape = 'u32[144,128]{1,0:T(1,128)}', space=vmem, size = 0x12000, scoped, tag = 'internal scratch']
  %s0 = inlined_call_operand.vmem [shape: bf16[300,16], index: 0, kind: input, shape index: {}]
  %s1 = inlined_call_operand.vmem [shape: f32[8,300], index: 1, kind: input, shape index: {}]
  %s2 = inlined_call_operand.vmem [shape: bf16[32,16], index: 2, kind: input, shape index: {}]
  %s3 = inlined_call_operand.vmem [shape: f32[32,1], index: 3, kind: input, shape index: {}]
  %s4 = inlined_call_operand.vmem [shape: bf16[32,32], index: 4, kind: input, shape index: {}]
  %s5 = inlined_call_operand.vmem [shape: f32[32,1], index: 5, kind: input, shape index: {}]
  %s6 = inlined_call_operand.vmem [shape: bf16[9,32], index: 6, kind: input, shape index: {}]
  %s7 = inlined_call_operand.vmem [shape: f32[9,1], index: 7, kind: input, shape index: {}]
  %s8 = inlined_call_operand.hbm [shape: f32[9,300], index: 8, kind: output, shape index: {}]
  %s9 = sld [smem:[#allocation0]]
  $region65: #{tpu_custom_call.1} parent=0
    _
  %s11 = ssub.s32 1, %s9
  %s12 = scalar_select 0, %s11, %s9
  $region1: #{tpu_custom_call.1} parent=0
    #allocation2 [shape = 'u8[16384]{0}', space=vmem, size = 0x4000, scoped, tag = 'output window, operand 0']
    #allocation3 [shape = 's32[2]{0}', space=sflag, size = 0x8, scoped, tag = 'scoped memory for tpu_custom_call.1']
    %13 = vsyncpa [#allocation3], 0
    %s14 = scalar_lea.sflag [#allocation3], 1
    %15 = vsyncpa %s14, 0
    loop: start=0, step=1, limit=5
    $region2: #{tpu_custom_call.1} parent=1 // loop_pre_header
      _
    $region3: #{tpu_custom_call.1} parent=1 // loop_header
      %s17 = sphi 0, %s21
      %p18 = scmp.ge.s32.totalorder %s17, 5
      %s27 = sphi 0, %s29
      %s30 = sphi 0, %s27
      %s31 = sphi 0, %s30
      %s47 = sphi 0, %s31
      %s53 = sphi 0, %s55
      %s56 = sphi 0, %s53
      %s57 = sphi 0, %s56
      %s73 = sphi 0, %s57
      %s77 = sphi 0, %s77
      %s79 = sphi 0, %s77
      %s80 = sphi 0, %s79
      %s94 = sphi 0, %s80
      %s98 = sphi 0, %s98
      %s100 = sphi 0, %s98
      %s101 = sphi 0, %s100
      %s115 = sphi 0, %s101
      %s119 = sphi 0, %s119
      %s121 = sphi 0, %s119
      %s122 = sphi 0, %s121
      %s136 = sphi 0, %s122
      %s140 = sphi 0, %s140
      %s142 = sphi 0, %s140
      %s143 = sphi 0, %s142
      %s157 = sphi 0, %s143
      %s161 = sphi 0, %s161
      %s163 = sphi 0, %s161
      %s164 = sphi 0, %s163
      %s178 = sphi 0, %s164
      %s182 = sphi 0, %s182
      %s184 = sphi 0, %s182
      %s185 = sphi 0, %s184
      %s199 = sphi 0, %s185
      %s205 = sphi 0, %s207
      %s208 = sphi 0, %s205
      %s209 = sphi 0, %s208
      %s225 = sphi 0, %s209
    $region4: #{tpu_custom_call.1} parent=1 // loop_header_branch
      %20 = sbr.rel (%p18) target = $region8
    $region5: #{tpu_custom_call.1} parent=1 // loop_body
      %s22 = ssub.s32 %s17, 1
      %s23 = ssub.s32 %s17, 2
      %s24 = sadd.s32 %s17, 1
      %s25 = ssub.s32 %s17, %s24
      %p26 = scmp.eq.s32.totalorder %s25, 0
      %s28 = sadd.s32 %s27, 1
      %s29 = scalar_select %p26, %s27, %s28
      %p32 = pneg %p26
      %p33 = scmp.eq.s32.totalorder %s17, 2
      %p34 = por %p32, %p33
      %p35 = scmp.ne.s32.totalorder %s27, %s30
      %p36 = scmp.eq.s32.totalorder %s17, 0
      %p37 = por %p35, %p36
      %p38 = scmp.ne.s32.totalorder %s27, %s30
      %p39 = scmp.eq.s32.totalorder %s22, 2
      %p40 = por %p38, %p39
      %p41 = scmp.ne.s32.totalorder %s30, %s31
      %p42 = scmp.eq.s32.totalorder %s22, 0
      %p43 = por %p41, %p42
      %p44 = scmp.ne.s32.totalorder %s30, %s31
      %p45 = scmp.eq.s32.totalorder %s23, 2
      %p46 = por %p44, %p45
      %p48 = scmp.ne.s32.totalorder %s31, %s47
      %p49 = scmp.eq.s32.totalorder %s23, 0
      %p50 = por %p48, %p49
      %s51 = ssub.s32 %s17, %s24
      %p52 = scmp.eq.s32.totalorder %s51, 0
      %s54 = sadd.s32 %s53, 1
      %s55 = scalar_select %p52, %s53, %s54
      %p58 = pneg %p52
      %p59 = scmp.eq.s32.totalorder %s17, 2
      %p60 = por %p58, %p59
      %p61 = scmp.ne.s32.totalorder %s53, %s56
      %p62 = scmp.eq.s32.totalorder %s17, 0
      %p63 = por %p61, %p62
      %p64 = scmp.ne.s32.totalorder %s53, %s56
      %p65 = scmp.eq.s32.totalorder %s22, 2
      %p66 = por %p64, %p65
      %p67 = scmp.ne.s32.totalorder %s56, %s57
      %p68 = scmp.eq.s32.totalorder %s22, 0
      %p69 = por %p67, %p68
      %p70 = scmp.ne.s32.totalorder %s56, %s57
      %p71 = scmp.eq.s32.totalorder %s23, 2
      %p72 = por %p70, %p71
      %p74 = scmp.ne.s32.totalorder %s57, %s73
      %p75 = scmp.eq.s32.totalorder %s23, 0
      %p76 = por %p74, %p75
      %s78 = sadd.s32 %s77, 1
      %p81 = scmp.eq.s32.totalorder %s17, 2
      %p82 = scmp.ne.s32.totalorder %s77, %s79
      %p83 = scmp.eq.s32.totalorder %s17, 0
      %p84 = por %p82, %p83
      %p85 = scmp.ne.s32.totalorder %s77, %s79
      %p86 = scmp.eq.s32.totalorder %s22, 2
      %p87 = por %p85, %p86
      %p88 = scmp.ne.s32.totalorder %s79, %s80
      %p89 = scmp.eq.s32.totalorder %s22, 0
      %p90 = por %p88, %p89
      %p91 = scmp.ne.s32.totalorder %s79, %s80
      %p92 = scmp.eq.s32.totalorder %s23, 2
      %p93 = por %p91, %p92
      %p95 = scmp.ne.s32.totalorder %s80, %s94
      %p96 = scmp.eq.s32.totalorder %s23, 0
      %p97 = por %p95, %p96
      %s99 = sadd.s32 %s98, 1
      %p102 = scmp.eq.s32.totalorder %s17, 2
      %p103 = scmp.ne.s32.totalorder %s98, %s100
      %p104 = scmp.eq.s32.totalorder %s17, 0
      %p105 = por %p103, %p104
      %p106 = scmp.ne.s32.totalorder %s98, %s100
      %p107 = scmp.eq.s32.totalorder %s22, 2
      %p108 = por %p106, %p107
      %p109 = scmp.ne.s32.totalorder %s100, %s101
      %p110 = scmp.eq.s32.totalorder %s22, 0
      %p111 = por %p109, %p110
      %p112 = scmp.ne.s32.totalorder %s100, %s101
      %p113 = scmp.eq.s32.totalorder %s23, 2
      %p114 = por %p112, %p113
      %p116 = scmp.ne.s32.totalorder %s101, %s115
      %p117 = scmp.eq.s32.totalorder %s23, 0
      %p118 = por %p116, %p117
      %s120 = sadd.s32 %s119, 1
      %p123 = scmp.eq.s32.totalorder %s17, 2
      %p124 = scmp.ne.s32.totalorder %s119, %s121
      %p125 = scmp.eq.s32.totalorder %s17, 0
      %p126 = por %p124, %p125
      %p127 = scmp.ne.s32.totalorder %s119, %s121
      %p128 = scmp.eq.s32.totalorder %s22, 2
      %p129 = por %p127, %p128
      %p130 = scmp.ne.s32.totalorder %s121, %s122
      %p131 = scmp.eq.s32.totalorder %s22, 0
      %p132 = por %p130, %p131
      %p133 = scmp.ne.s32.totalorder %s121, %s122
      %p134 = scmp.eq.s32.totalorder %s23, 2
      %p135 = por %p133, %p134
      %p137 = scmp.ne.s32.totalorder %s122, %s136
      %p138 = scmp.eq.s32.totalorder %s23, 0
      %p139 = por %p137, %p138
      %s141 = sadd.s32 %s140, 1
      %p144 = scmp.eq.s32.totalorder %s17, 2
      %p145 = scmp.ne.s32.totalorder %s140, %s142
      %p146 = scmp.eq.s32.totalorder %s17, 0
      %p147 = por %p145, %p146
      %p148 = scmp.ne.s32.totalorder %s140, %s142
      %p149 = scmp.eq.s32.totalorder %s22, 2
      %p150 = por %p148, %p149
      %p151 = scmp.ne.s32.totalorder %s142, %s143
      %p152 = scmp.eq.s32.totalorder %s22, 0
      %p153 = por %p151, %p152
      %p154 = scmp.ne.s32.totalorder %s142, %s143
      %p155 = scmp.eq.s32.totalorder %s23, 2
      %p156 = por %p154, %p155
      %p158 = scmp.ne.s32.totalorder %s143, %s157
      %p159 = scmp.eq.s32.totalorder %s23, 0
      %p160 = por %p158, %p159
      %s162 = sadd.s32 %s161, 1
      %p165 = scmp.eq.s32.totalorder %s17, 2
      %p166 = scmp.ne.s32.totalorder %s161, %s163
      %p167 = scmp.eq.s32.totalorder %s17, 0
      %p168 = por %p166, %p167
      %p169 = scmp.ne.s32.totalorder %s161, %s163
      %p170 = scmp.eq.s32.totalorder %s22, 2
      %p171 = por %p169, %p170
      %p172 = scmp.ne.s32.totalorder %s163, %s164
      %p173 = scmp.eq.s32.totalorder %s22, 0
      %p174 = por %p172, %p173
      %p175 = scmp.ne.s32.totalorder %s163, %s164
      %p176 = scmp.eq.s32.totalorder %s23, 2
      %p177 = por %p175, %p176
      %p179 = scmp.ne.s32.totalorder %s164, %s178
      %p180 = scmp.eq.s32.totalorder %s23, 0
      %p181 = por %p179, %p180
      %s183 = sadd.s32 %s182, 1
      %p186 = scmp.eq.s32.totalorder %s17, 2
      %p187 = scmp.ne.s32.totalorder %s182, %s184
      %p188 = scmp.eq.s32.totalorder %s17, 0
      %p189 = por %p187, %p188
      %p190 = scmp.ne.s32.totalorder %s182, %s184
      %p191 = scmp.eq.s32.totalorder %s22, 2
      %p192 = por %p190, %p191
      %p193 = scmp.ne.s32.totalorder %s184, %s185
      %p194 = scmp.eq.s32.totalorder %s22, 0
      %p195 = por %p193, %p194
      %p196 = scmp.ne.s32.totalorder %s184, %s185
      %p197 = scmp.eq.s32.totalorder %s23, 2
      %p198 = por %p196, %p197
      %p200 = scmp.ne.s32.totalorder %s185, %s199
      %p201 = scmp.eq.s32.totalorder %s23, 0
      %p202 = por %p200, %p201
      %s203 = ssub.s32 %s17, %s24
      %p204 = scmp.eq.s32.totalorder %s203, 0
      %s206 = sadd.s32 %s205, 1
      %s207 = scalar_select %p204, %s205, %s206
      %p210 = pneg %p204
      %p211 = scmp.eq.s32.totalorder %s17, 2
      %p212 = por %p210, %p211
      %p213 = scmp.ne.s32.totalorder %s205, %s208
      %p214 = scmp.eq.s32.totalorder %s17, 0
      %p215 = por %p213, %p214
      %p216 = scmp.ne.s32.totalorder %s205, %s208
      %p217 = scmp.eq.s32.totalorder %s22, 2
      %p218 = por %p216, %p217
      %p219 = scmp.ne.s32.totalorder %s208, %s209
      %p220 = scmp.eq.s32.totalorder %s22, 0
      %p221 = por %p219, %p220
      %p222 = scmp.ne.s32.totalorder %s208, %s209
      %p223 = scmp.eq.s32.totalorder %s23, 2
      %p224 = por %p222, %p223
      %p226 = scmp.ne.s32.totalorder %s209, %s225
      %p227 = scmp.eq.s32.totalorder %s23, 0
      %p228 = por %p226, %p227
      %p229 = scmp.le.s32.totalorder 1, %s17
      %p230 = scmp.lt.s32.totalorder %s17, 4
      %p231 = pnand %p229, %p230
      %p232 = pneg %p231
      // Predicated region
      $region9: #{tpu_custom_call.1} parent=5 // pred_check
        _
      $region10: #{tpu_custom_call.1} parent=5 // pred_check_branch
        %234 = sbr.rel (%p231) target = $region12
      $region11: #{tpu_custom_call.1} parent=5 // pred_region
        %s235 = ssub.s32 %s17, 1
        // Predicated region
        $region13: #{tpu_custom_call.1} parent=11 // pred_check
          %p236 = pneg %p90
        $region14: #{tpu_custom_call.1} parent=11 // pred_check_branch
          %238 = sbr.rel (%p236) target = $region16
        $region15: #{tpu_custom_call.1} parent=11 // pred_region
          _
        $region16: #{tpu_custom_call.1} parent=11 // pred_fallthru
          _
        // Predicated region
        $region17: #{tpu_custom_call.1} parent=11 // pred_check
          %p239 = pneg %p111
        $region18: #{tpu_custom_call.1} parent=11 // pred_check_branch
          %241 = sbr.rel (%p239) target = $region20
        $region19: #{tpu_custom_call.1} parent=11 // pred_region
          _
        $region20: #{tpu_custom_call.1} parent=11 // pred_fallthru
          _
        // Predicated region
        $region21: #{tpu_custom_call.1} parent=11 // pred_check
          %p242 = pneg %p132
        $region22: #{tpu_custom_call.1} parent=11 // pred_check_branch
          %244 = sbr.rel (%p242) target = $region24
        $region23: #{tpu_custom_call.1} parent=11 // pred_region
          _
        $region24: #{tpu_custom_call.1} parent=11 // pred_fallthru
          _
        // Predicated region
        $region25: #{tpu_custom_call.1} parent=11 // pred_check
          %p245 = pneg %p153
        $region26: #{tpu_custom_call.1} parent=11 // pred_check_branch
          %247 = sbr.rel (%p245) target = $region28
        $region27: #{tpu_custom_call.1} parent=11 // pred_region
          _
        $region28: #{tpu_custom_call.1} parent=11 // pred_fallthru
          _
        // Predicated region
        $region29: #{tpu_custom_call.1} parent=11 // pred_check
          %p248 = pneg %p174
        $region30: #{tpu_custom_call.1} parent=11 // pred_check_branch
          %250 = sbr.rel (%p248) target = $region32
        $region31: #{tpu_custom_call.1} parent=11 // pred_region
          _
        $region32: #{tpu_custom_call.1} parent=11 // pred_fallthru
          _
        // Predicated region
        $region33: #{tpu_custom_call.1} parent=11 // pred_check
          %p251 = pneg %p195
        $region34: #{tpu_custom_call.1} parent=11 // pred_check_branch
          %253 = sbr.rel (%p251) target = $region36
        $region35: #{tpu_custom_call.1} parent=11 // pred_region
          _
        $region36: #{tpu_custom_call.1} parent=11 // pred_fallthru
          _
      $region12: #{tpu_custom_call.1} parent=5 // pred_fallthru
        _
      %p254 = scmp.lt.s32.totalorder %s17, 3
      // Predicated region
      $region37: #{tpu_custom_call.1} parent=5 // pred_check
        %p255 = pneg %p254
      $region38: #{tpu_custom_call.1} parent=5 // pred_check_branch
        %257 = sbr.rel (%p255) target = $region40
      $region39: #{tpu_custom_call.1} parent=5 // pred_region
        // Predicated region
        $region41: #{tpu_custom_call.1} parent=39 // pred_check
          %p258 = pneg %p37
        $region42: #{tpu_custom_call.1} parent=39 // pred_check_branch
          %260 = sbr.rel (%p258) target = $region44
        $region43: #{tpu_custom_call.1} parent=39 // pred_region
          %s261 = smul.u32 16, %s17
          %s262 = ssub.s32 38, %s261
          %p263 = scmp.lt.s32.totalorder %s262, 16
          %s264 = scalar_select %p263, %s262, 16
          %s265 = smul.u32 64, %s264
          %p266 = scmp.lt.s32.totalorder %s261, 37
          %s267 = scalar_select %p266, %s261, 37
          %s268 = smul.addr %s267, 4
          %s269 = scalar_lea.vmem %s0, %s268
          %s270 = smul.u32 16, %s17
          %s271 = ssub.s32 38, %s270
          %p272 = scmp.lt.s32.totalorder %s271, 16
          %s273 = scalar_select %p272, %s271, 16
          %s274 = smul.u32 64, %s273
        $region44: #{tpu_custom_call.1} parent=39 // pred_fallthru
          _
        // Predicated region
        $region45: #{tpu_custom_call.1} parent=39 // pred_check
          %p275 = pneg %p63
        $region46: #{tpu_custom_call.1} parent=39 // pred_check_branch
          %277 = sbr.rel (%p275) target = $region48
        $region47: #{tpu_custom_call.1} parent=39 // pred_region
          %p278 = scmp.lt.s32.totalorder %s17, 2
          %s279 = scalar_select %p278, %s17, 2
          %s280 = smul.addr %s279, 8
          %s281 = scalar_lea.vmem %s1, %s280
        $region48: #{tpu_custom_call.1} parent=39 // pred_fallthru
          _
      $region40: #{tpu_custom_call.1} parent=5 // pred_fallthru
        _
      %p282 = scmp.le.s32.totalorder 1, %s17
      %p283 = scmp.lt.s32.totalorder %s17, 4
      %p284 = pnand %p282, %p283
      %p285 = pneg %p284
      // Predicated region
      $region49: #{tpu_custom_call.1} parent=5 // pred_check
        _
      $region50: #{tpu_custom_call.1} parent=5 // pred_check_branch
        %287 = sbr.rel (%p284) target = $region52
      $region51: #{tpu_custom_call.1} parent=5 // pred_region
        %s288 = ssub.s32 %s17, 1
        %s289 = smul.u32 16, %s22
        %s290 = ssub.s32 38, %s289
        %p291 = scmp.lt.s32.totalorder %s290, 16
        %s292 = scalar_select %p291, %s290, 16
        %s293 = smul.u32 64, %s292
        %p294 = scmp.lt.s32.totalorder %s289, 37
        %s295 = scalar_select %p294, %s289, 37
        %s296 = smul.addr %s295, 4
        %s297 = scalar_lea.vmem %s0, %s296
        %p298 = pneg %p43
        %p299 = pneg %p40
        %p300 = scmp.lt.s32.totalorder %s22, 2
        %s301 = scalar_select %p300, %s22, 2
        %s302 = smul.addr %s301, 8
        %s303 = scalar_lea.vmem %s1, %s302
        %p304 = pneg %p69
        %p305 = pneg %p66
        %p306 = pneg %p90
        %p307 = pneg %p87
        %p308 = pneg %p111
        %p309 = pneg %p108
        %p310 = pneg %p132
        %p311 = pneg %p129
        %p312 = pneg %p153
        %p313 = pneg %p150
        %p314 = pneg %p174
        %p315 = pneg %p171
        %p316 = pneg %p195
        %p317 = pneg %p192
        %p318 = pneg %p221
        %p319 = pneg %p218
        %s320 = sand.u32 %s208, 1
        %s321 = scalar_lea.sflag [#allocation3], %s320
        %s322 = sand.u32 %s208, 1
        %s323 = smul.addr %s322, 16
        %s324 = scalar_lea.vmem [#allocation2], %s323
        %s325 = smul.u32 16, %s22
        %s326 = ssub.s32 38, %s325
        %p327 = scmp.lt.s32.totalorder %s326, 16
        %s328 = scalar_select %p327, %s326, 16
        %s329 = smul.u32 64, %s328
        %p330 = scmp.lt.s32.totalorder %s325, 37
        %s331 = scalar_select %p330, %s325, 37
        %s332 = smul.addr %s331, 4
        %s333 = scalar_lea.vmem %s0, %s332
        %s334 = smul.u32 16, %s22
        %s335 = ssub.s32 38, %s334
        %p336 = scmp.lt.s32.totalorder %s335, 16
        %s337 = scalar_select %p336, %s335, 16
        %s338 = smul.u32 64, %s337
        %p339 = scmp.lt.s32.totalorder %s22, 2
        %s340 = scalar_select %p339, %s22, 2
        %s341 = smul.addr %s340, 8
        %s342 = scalar_lea.vmem %s1, %s341
        %v344 = vld [vmem:[%s333] sm:$0xf]
        %v345 = vld [vmem:[%s333 + $0x4] sm:$0xf]
        %v346 = vld [vmem:[%s333 + $0x8] sm:$0xf]
        %v347 = vld [vmem:[%s333 + $0xc] sm:$0xf]
        %v348 = vld [vmem:[%s333 + $0x10] sm:$0xf]
        %v349 = vld [vmem:[%s333 + $0x14] sm:$0xf]
        %v350 = vld [vmem:[%s333 + $0x18] sm:$0xf]
        %v351 = vld [vmem:[%s333 + $0x1c] sm:$0xf]
        %v352 = vld [vmem:[%s333 + $0x20] sm:$0xf]
        %v353 = vld [vmem:[%s333 + $0x24] sm:$0xf]
        %v354 = vld [vmem:[%s333 + $0x28] sm:$0xf]
        %v355 = vld [vmem:[%s333 + $0x2c] sm:$0xf]
        %v356 = vld [vmem:[%s333 + $0x30] sm:$0xf]
        %v357 = vld [vmem:[%s333 + $0x34] sm:$0xf]
        %v358 = vld [vmem:[%s333 + $0x38] sm:$0xf]
        %v359 = vld [vmem:[%s333 + $0x3c] sm:$0xf]
        %v360 = vld [vmem:[%s2] sm:$0xf]
        %v361 = vld [vmem:[%s2 + $0x4] sm:$0xf]
        %v362 = vld [vmem:[%s2 + $0x8] sm:$0xf]
        %v363 = vld [vmem:[%s2 + $0xc] sm:$0xf]
        %v364 = vld [vmem:[%s3] sm:$0xff]
        %v365 = vld [vmem:[%s3 + $0x8] sm:$0xff]
        %v366 = vld [vmem:[%s3 + $0x10] sm:$0xff]
        %v367 = vld [vmem:[%s3 + $0x18] sm:$0xff]
        %369 = vset.pattern.permute.xlu0 0
        %370 = vperm.xlu0 %369, %v364
        %v371 = vpop.permute.xlu0 %370
        %374 = vset.pattern.permute.xlu0 0
        %375 = vperm.xlu0 %374, %v365
        %v376 = vpop.permute.xlu0 %375
        %379 = vset.pattern.permute.xlu0 0
        %380 = vperm.xlu0 %379, %v366
        %v381 = vpop.permute.xlu0 %380
        %384 = vset.pattern.permute.xlu0 0
        %385 = vperm.xlu0 %384, %v367
        %v386 = vpop.permute.xlu0 %385
        %v392 = vunpack.c.l.b16 %v360
        %v393 = vunpack.c.l.b16 %v361
        %v394 = vunpack.c.l.b16 %v362
        %v395 = vunpack.c.l.b16 %v363
        %v396 = vpack.c.b16 %v393, %v392
        %v397 = vpack.c.b16 %v395, %v394
        %v414 = vunpack.c.l.b16 %v344
        %v415 = vunpack.c.l.b16 %v345
        %v416 = vunpack.c.l.b16 %v346
        %v417 = vunpack.c.l.b16 %v347
        %v418 = vunpack.c.l.b16 %v348
        %v419 = vunpack.c.l.b16 %v349
        %v420 = vunpack.c.l.b16 %v350
        %v421 = vunpack.c.l.b16 %v351
        %v422 = vunpack.c.l.b16 %v352
        %v423 = vunpack.c.l.b16 %v353
        %v424 = vunpack.c.l.b16 %v354
        %v425 = vunpack.c.l.b16 %v355
        %v426 = vunpack.c.l.b16 %v356
        %v427 = vunpack.c.l.b16 %v357
        %v428 = vunpack.c.l.b16 %v358
        %v429 = vunpack.c.l.b16 %v359
        %v430 = vpack.c.b16 %v415, %v414
        %v431 = vpack.c.b16 %v417, %v416
        %v432 = vpack.c.b16 %v419, %v418
        %v433 = vpack.c.b16 %v421, %v420
        %v434 = vpack.c.b16 %v423, %v422
        %v435 = vpack.c.b16 %v425, %v424
        %v436 = vpack.c.b16 %v427, %v426
        %v437 = vpack.c.b16 %v429, %v428
        %vm438 = vcmask 130048
        %v440 = vsel %vm438, %v396, 0
        %v443 = vsel %vm438, %v397, 0
        %v446 = vsel %vm438, %v430, 0
        %v449 = vsel %vm438, %v431, 0
        %v452 = vsel %vm438, %v432, 0
        %v455 = vsel %vm438, %v433, 0
        %v458 = vsel %vm438, %v434, 0
        %v461 = vsel %vm438, %v435, 0
        %v464 = vsel %vm438, %v436, 0
        %v467 = vsel %vm438, %v437, 0
        %469 = vmatprep.subr.bf16.mxu0 0
        %470 = vmatpush1.bf16.xpose.msra.mxu0 %v467
        %471 = vmatprep.subr.bf16.mxu0 0
        %472 = vmatpush1.bf16.xpose.msra.mxu0 %v464
        %473 = vmatprep.subr.bf16.mxu0 0
        %474 = vmatpush1.bf16.xpose.msra.mxu0 %v461
        %475 = vmatprep.subr.bf16.mxu0 0
        %476 = vmatpush1.bf16.xpose.msra.mxu0 %v458
        %477 = vmatprep.subr.bf16.mxu0 0
        %478 = vmatpush1.bf16.xpose.msra.mxu0 %v455
        %479 = vmatprep.subr.bf16.mxu0 0
        %480 = vmatpush1.bf16.xpose.msra.mxu0 %v452
        %481 = vmatprep.subr.bf16.mxu0 0
        %482 = vmatpush1.bf16.xpose.msra.mxu0 %v449
        %483 = vmatprep.subr.bf16.mxu0 0
        %484 = vmatpush1.bf16.xpose.msra.mxu0 %v446
        %485 = vmatprep.subr.bf16.mxu0 0
        %486 = vmatpush2.bf16.xpose.msra.mxu0 0
        %487 = vmatprep.subr.bf16.mxu0 0
        %488 = vmatpush2.bf16.xpose.msra.mxu0 0
        %489 = vmatprep.subr.bf16.mxu0 0
        %490 = vmatpush2.bf16.xpose.msra.mxu0 0
        %491 = vmatprep.subr.bf16.mxu0 0
        %492 = vmatpush2.bf16.xpose.msra.mxu0 0
        %493 = vmatprep.subr.bf16.mxu0 0
        %494 = vmatpush2.bf16.xpose.msra.mxu0 0
        %495 = vmatprep.subr.bf16.mxu0 0
        %496 = vmatpush2.bf16.xpose.msra.mxu0 0
        %497 = vmatprep.subr.bf16.mxu0 0
        %498 = vmatpush2.bf16.xpose.msra.mxu0 0
        %499 = vmatprep.subr.bf16.mxu0 0
        %500 = vmatpush2.bf16.xpose.msra.mxu0 0
        %501 = vmatprep.mubr.bf16.mxu0 0
        %502 = vmatmul.mubr.bf16.gmra.mxu0 %v440
        %v503 = vpop.f32.mrf.mxu0
        %v504 = vadd.f32 %v371, %v503
        %v505 = vpop.f32.mrf.mxu0
        %v506 = vpop.f32.mrf.mxu0
        %v507 = vadd.f32 %v376, %v506
        %v508 = vpop.f32.mrf.mxu0
        %509 = vmatprep.mubr.bf16.mxu0 0
        %510 = vmatmul.mubr.bf16.gmra.mxu0 %v443
        %v511 = vpop.f32.mrf.mxu0
        %v512 = vadd.f32 %v381, %v511
        %v513 = vpop.f32.mrf.mxu0
        %v514 = vpop.f32.mrf.mxu0
        %v515 = vadd.f32 %v386, %v514
        %v516 = vpop.f32.mrf.mxu0
        %517 = vdwg.mxu0
        %v518 = vtanh.pop %v504
        %v519 = vtanh.pop %v507
        %v520 = vtanh.pop %v512
        %v521 = vtanh.pop %v515
        %v522 = vld [vmem:[%s4] sm:$0xf]
        %v523 = vld [vmem:[%s4 + $0x4] sm:$0xf]
        %v524 = vld [vmem:[%s4 + $0x8] sm:$0xf]
        %v525 = vld [vmem:[%s4 + $0xc] sm:$0xf]
        %v526 = vpack.c.bf16 %v519, %v518
        %v527 = vpack.c.bf16 %v521, %v520
        %v528 = vld [vmem:[%s5] sm:$0xff]
        %v529 = vld [vmem:[%s5 + $0x8] sm:$0xff]
        %v530 = vld [vmem:[%s5 + $0x10] sm:$0xff]
        %v531 = vld [vmem:[%s5 + $0x18] sm:$0xff]
        %533 = vset.pattern.permute.xlu0 0
        %534 = vperm.xlu0 %533, %v528
        %v535 = vpop.permute.xlu0 %534
        %538 = vset.pattern.permute.xlu0 0
        %539 = vperm.xlu0 %538, %v529
        %v540 = vpop.permute.xlu0 %539
        %543 = vset.pattern.permute.xlu0 0
        %544 = vperm.xlu0 %543, %v530
        %v545 = vpop.permute.xlu0 %544
        %548 = vset.pattern.permute.xlu0 0
        %549 = vperm.xlu0 %548, %v531
        %v550 = vpop.permute.xlu0 %549
        %v556 = vunpack.c.l.b16 %v522
        %v557 = vunpack.c.l.b16 %v523
        %v558 = vunpack.c.l.b16 %v524
        %v559 = vunpack.c.l.b16 %v525
        %v560 = vpack.c.b16 %v557, %v556
        %v561 = vpack.c.b16 %v559, %v558
        %vm562 = vcmask 261120
        %v564 = vsel %vm562, %v560, 0
        %v567 = vsel %vm562, %v561, 0
        %569 = vmatprep.subr.bf16.mxu0 0
        %570 = vmatpush1.bf16.msra.mxu0 0
        %571 = vmatprep.subr.bf16.mxu0 0
        %572 = vmatpush1.bf16.msra.mxu0 0
        %573 = vmatprep.subr.bf16.mxu0 0
        %574 = vmatpush1.bf16.msra.mxu0 0
        %575 = vmatprep.subr.bf16.mxu0 0
        %576 = vmatpush1.bf16.msra.mxu0 0
        %577 = vmatprep.subr.bf16.mxu0 0
        %578 = vmatpush1.bf16.msra.mxu0 0
        %579 = vmatprep.subr.bf16.mxu0 0
        %580 = vmatpush1.bf16.msra.mxu0 0
        %581 = vmatprep.subr.bf16.mxu0 0
        %582 = vmatpush1.bf16.msra.mxu0 %v527
        %583 = vmatprep.subr.bf16.mxu0 0
        %584 = vmatpush1.bf16.msra.mxu0 %v526
        %585 = vmatprep.subr.bf16.mxu0 0
        %586 = vmatpush2.bf16.msra.mxu0 0
        %587 = vmatprep.subr.bf16.mxu0 0
        %588 = vmatpush2.bf16.msra.mxu0 0
        %589 = vmatprep.subr.bf16.mxu0 0
        %590 = vmatpush2.bf16.msra.mxu0 0
        %591 = vmatprep.subr.bf16.mxu0 0
        %592 = vmatpush2.bf16.msra.mxu0 0
        %593 = vmatprep.subr.bf16.mxu0 0
        %594 = vmatpush2.bf16.msra.mxu0 0
        %595 = vmatprep.subr.bf16.mxu0 0
        %596 = vmatpush2.bf16.msra.mxu0 0
        %597 = vmatprep.subr.bf16.mxu0 0
        %598 = vmatpush2.bf16.msra.mxu0 0
        %599 = vmatprep.subr.bf16.mxu0 0
        %600 = vmatpush2.bf16.msra.mxu0 0
        %601 = vmatprep.mubr.bf16.mxu0 0
        %602 = vmatmul.mubr.bf16.gmra.mxu0 %v564
        %v603 = vpop.f32.mrf.mxu0
        %v604 = vadd.f32 %v535, %v603
        %v605 = vpop.f32.mrf.mxu0
        %v606 = vpop.f32.mrf.mxu0
        %v607 = vadd.f32 %v540, %v606
        %v608 = vpop.f32.mrf.mxu0
        %609 = vmatprep.mubr.bf16.mxu0 0
        %610 = vmatmul.mubr.bf16.gmra.mxu0 %v567
        %v611 = vpop.f32.mrf.mxu0
        %v612 = vadd.f32 %v545, %v611
        %v613 = vpop.f32.mrf.mxu0
        %v614 = vpop.f32.mrf.mxu0
        %v615 = vadd.f32 %v550, %v614
        %v616 = vpop.f32.mrf.mxu0
        %617 = vdwg.mxu0
        %v618 = vtanh.pop %v604
        %v619 = vtanh.pop %v607
        %v620 = vtanh.pop %v612
        %v621 = vtanh.pop %v615
        %v622 = vld [vmem:[%s6] sm:$0xf]
        %v623 = vld [vmem:[%s6 + $0x4] sm:$0x1]
        %v624 = vpack.c.bf16 %v619, %v618
        %v625 = vpack.c.bf16 %v621, %v620
        %v626 = vld [vmem:[%s7] sm:$0xff]
        %v627 = vld [vmem:[%s7 + $0x8] sm:$0x1]
        %629 = vset.pattern.permute.xlu0 0
        %630 = vperm.xlu0 %629, %v626
        %v631 = vpop.permute.xlu0 %630
        %634 = vset.pattern.permute.xlu0 0
        %635 = vperm.xlu0 %634, %v627
        %v636 = vpop.permute.xlu0 %635
        %v640 = vunpack.c.l.b16 %v622
        %v641 = vunpack.c.l.b16 %v623
        %v642 = vpack.c.b16 %v641, %v640
        %v644 = vsel %vm562, %v642, 0
        %646 = vmatprep.subr.bf16.mxu0 0
        %647 = vmatpush1.bf16.msra.mxu0 0
        %648 = vmatprep.subr.bf16.mxu0 0
        %649 = vmatpush1.bf16.msra.mxu0 0
        %650 = vmatprep.subr.bf16.mxu0 0
        %651 = vmatpush1.bf16.msra.mxu0 0
        %652 = vmatprep.subr.bf16.mxu0 0
        %653 = vmatpush1.bf16.msra.mxu0 0
        %654 = vmatprep.subr.bf16.mxu0 0
        %655 = vmatpush1.bf16.msra.mxu0 0
        %656 = vmatprep.subr.bf16.mxu0 0
        %657 = vmatpush1.bf16.msra.mxu0 0
        %658 = vmatprep.subr.bf16.mxu0 0
        %659 = vmatpush1.bf16.msra.mxu0 %v625
        %660 = vmatprep.subr.bf16.mxu0 0
        %661 = vmatpush1.bf16.msra.mxu0 %v624
        %662 = vmatprep.subr.bf16.mxu0 0
        %663 = vmatpush2.bf16.msra.mxu0 0
        %664 = vmatprep.subr.bf16.mxu0 0
        %665 = vmatpush2.bf16.msra.mxu0 0
        %666 = vmatprep.subr.bf16.mxu0 0
        %667 = vmatpush2.bf16.msra.mxu0 0
        %668 = vmatprep.subr.bf16.mxu0 0
        %669 = vmatpush2.bf16.msra.mxu0 0
        %670 = vmatprep.subr.bf16.mxu0 0
        %671 = vmatpush2.bf16.msra.mxu0 0
        %672 = vmatprep.subr.bf16.mxu0 0
        %673 = vmatpush2.bf16.msra.mxu0 0
        %674 = vmatprep.subr.bf16.mxu0 0
        %675 = vmatpush2.bf16.msra.mxu0 0
        %676 = vmatprep.subr.bf16.mxu0 0
        %677 = vmatpush2.bf16.msra.mxu0 0
        %678 = vmatprep.mubr.bf16.mxu0 0
        %679 = vmatmul.mubr.bf16.gmra.mxu0 %v644
        %v680 = vpop.f32.mrf.mxu0
        %v681 = vadd.f32 %v631, %v680
        %v682 = vpop.f32.mrf.mxu0
        %v683 = vpop.f32.mrf.mxu0
        %v684 = vadd.f32 %v636, %v683
        %v685 = vpop.f32.mrf.mxu0
        %686 = vdwg.mxu0
        %v687 = vld [vmem:[%s342] sm:$0xff]
        %v688 = vand.u32 2147483647, %v681
        %v689 = vsub.f32 0.0, %v688
        %v690 = vmul.f32 %v689, 1.442695
        %v691 = vpow.pop %v690
        %v692 = vmul.f32 %v687, %v681
        %v693 = vmax.f32 %v681, 0.0
        %v694 = vsub.f32 %v692, %v693
        %v695 = vadd.f32 %v691, 1.0
        %v696 = vlog2.pop %v695
        %v697 = vmul.f32 %v696, 0.6931472
        %v698 = vmul.f32 -0.5, %v691
        %v699 = vadd.f32 %v698, 1.0
        %v700 = vmul.f32 %v699, %v691
        %v701 = vand.u32 2147483647, %v691
        %vm702 = vcmp.lt.f32.partialorder %v701, 0.0004427343
        %v703 = vsel %vm702, %v700, %v697
        %v704 = vsub.f32 %v694, %v703
        %v705 = vadd.f32 %v691, 1.0
        %v706 = vrcp.pop %v705
        %vm707 = vcmp.ge.f32.partialorder %v681, 0.0
        %v708 = vmul.f32 %v691, %v706
        %v709 = vsel %vm707, %v706, %v708
        %v710 = vmax.f32 %v709, 1.1920929e-07
        %v711 = vmin.f32 %v710, 0.9999999
        %vm712 = vcmp.lt.f32.partialorder %v711, 0.499
        %vm713 = vcmp.gt.f32.partialorder %v711, 0.501
        %vm714 = vmor %vm712, %vm713
        %v715 = vsel %vm714, %v711, 0.499
        %v716 = vsub.f32 0.0, %v715
        %v717 = vadd.f32 %v716, 1.0
        %v718 = vlog2.pop %v717
        %v719 = vmul.f32 %v718, 0.6931472
        %v720 = vmul.f32 -0.5, %v716
        %v721 = vadd.f32 %v720, 1.0
        %v722 = vmul.f32 %v721, %v716
        %v723 = vand.u32 2147483647, %v716
        %vm724 = vcmp.lt.f32.partialorder %v723, 0.0004427343
        %v725 = vsel %vm724, %v722, %v719
        %v726 = vlog2.pop %v715
        %v727 = vmul.f32 %v726, 0.6931472
        %v728 = vsub.f32 %v725, %v727
        %v729 = vand.u32 2147483647, %v728
        %v730 = vlog2.pop %v729
        %v731 = vmul.f32 %v730, 0.6931472
        %v732 = vmul.f32 %v715, 2.0
        %v733 = vsub.f32 1.0, %v732
        %v734 = vand.u32 2147483647, %v733
        %v735 = vlog2.pop %v734
        %v736 = vmul.f32 %v735, 0.6931472
        %v737 = vsub.f32 %v731, %v736
        %v738 = vsub.f32 %v711, 0.5
        %v739 = vmul.f32 %v738, %v738
        %v740 = vmul.f32 %v739, 2.3111112
        %v741 = vadd.f32 %v740, 1.3333334
        %v742 = vmul.f32 %v741, %v739
        %v743 = vadd.f32 %v742, 0.6931472
        %v744 = vsel %vm714, %v737, %v743
        %v745 = vadd.f32 %v704, %v744
        %v746 = vrot.slane %v745, 4
        %v747 = vadd.f32 %v745, %v746
        %v748 = vrot.slane %v747, 2
        %v749 = vadd.f32 %v747, %v748
        %v750 = vrot.slane %v749, 1
        %v751 = vadd.f32 %v749, %v750
        %v752 = vlaneseq
        %v753 = vshrl.u32 %v752, 7
        %v754 = vadd.s32 %v753, 8
        %vm755 = vcmp.eq.s32.totalorder %v753, 8
        %vm756 = vcmp.eq.s32.totalorder %v754, 8
        %v757 = vsel %vm755, %v751, %v681
        %v758 = vsel %vm756, %v751, %v684
        %759 = vst [vmem:[%s324] sm:$0xff] %v757
        %760 = vst [vmem:[%s324 + $0x8] sm:$0x1] %v758
        %s761 = sand.u32 %s208, 1
        %s762 = scalar_lea.sflag [#allocation3], %s761
        %s763 = sand.u32 %s208, 1
        %s764 = smul.addr %s763, 16
        %s765 = scalar_lea.vmem [#allocation2], %s764
        // Predicated region
        $region53: #{tpu_custom_call.1} parent=51 // pred_check
          %p766 = pneg %p218
        $region54: #{tpu_custom_call.1} parent=51 // pred_check_branch
          %768 = sbr.rel (%p766) target = $region56
        $region55: #{tpu_custom_call.1} parent=51 // pred_region
          %s770 = ssub.s32 256, 256
          %771 = vsyncadd %s762, %s770
          %s772 = smul.addr %s22, 128
          %s773 = scalar_lea.hbm %s8, %s772
          %s774 = sshll.u32 %s765, 4
          %s775 = int_to_ptr.vmem [resolvable:$true] %s774
          %780 = dma.vmem_to_hbm [thread:$0]  %s775, 256, %s773, %s762, 128, 384, 8
        $region56: #{tpu_custom_call.1} parent=51 // pred_fallthru
          _
      $region52: #{tpu_custom_call.1} parent=5 // pred_fallthru
        _
      %p781 = scmp.le.s32.totalorder 2, %s17
      // Predicated region
      $region57: #{tpu_custom_call.1} parent=5 // pred_check
        %p782 = pneg %p781
      $region58: #{tpu_custom_call.1} parent=5 // pred_check_branch
        %784 = sbr.rel (%p782) target = $region60
      $region59: #{tpu_custom_call.1} parent=5 // pred_region
        %s785 = ssub.s32 %s17, 2
        // Predicated region
        $region61: #{tpu_custom_call.1} parent=59 // pred_check
          %p786 = pneg %p224
        $region62: #{tpu_custom_call.1} parent=59 // pred_check_branch
          %788 = sbr.rel (%p786) target = $region64
        $region63: #{tpu_custom_call.1} parent=59 // pred_region
          %s789 = sand.u32 %s209, 1
          %s790 = scalar_lea.sflag [#allocation3], %s789
          %s791 = sand.u32 %s209, 1
          %s792 = smul.addr %s791, 16
          %s793 = scalar_lea.vmem [#allocation2], %s792
          %794 = dma.done %s790, 256
        $region64: #{tpu_custom_call.1} parent=59 // pred_fallthru
          _
      $region60: #{tpu_custom_call.1} parent=5 // pred_fallthru
        _
    $region6: #{tpu_custom_call.1} parent=1 // loop_footer
      %s21 = sadd.s32 1, %s17
    $region7: #{tpu_custom_call.1} parent=1 // loop_footer_branch
      %16 = sbr.rel target = $region3
    $region8: #{tpu_custom_call.1} parent=1 // loop_exit
      _
    %795 = vsyncpa [#allocation3], 1
    %s796 = scalar_lea.sflag [#allocation3], 1
    %797 = vsyncpa %s796, 1

</llo_original>
